<compile_context>
chip_gen: v7x
topology: tpu7x:2x2x1
jax: 0.10.0
libtpu: 0.0.40
codegen_flags: <defaults>
</compile_context>

<pallas_src>
from functools import partial

import jax
import jax.numpy as jnp
from jax import lax
from jax.experimental import pallas as pl
from jax.experimental.pallas import tpu as pltpu

LANE = 128


def _round_up(x, m):
    return ((x + m - 1) // m) * m


def _vmem_budget_bytes():
    """Generation-aware usable-VMEM budget (leaves ~25% headroom)."""
    cap = None
    try:
        info = pltpu.get_tpu_info()
        cap = int(getattr(info, "vmem_capacity_bytes", 0)) or None
    except Exception:
        cap = None
    if cap is None:
        cap = 64 * 1024 * 1024  # conservative fallback (v7x per-TC physical)
    return max(16 * 1024 * 1024, min((cap * 3) // 4, 100 * 1024 * 1024))


# ----------------------------------------------------------------------------
# In-kernel helpers
# ----------------------------------------------------------------------------
def _chunked_col_sum(x_ref, n_chunks, base_off, s_total, mask_tail):
    """Sum a (C, n_chunks*128) lane-major slab into a (C, 128) f32 carry using
    only VPU adds (one lane-aligned 128-wide chunk per step).  Out-of-range
    lanes (>= s_total) are masked to zero when mask_tail is statically True."""
    c_blk = x_ref.shape[0]
    col = (lax.broadcasted_iota(jnp.int32, (c_blk, LANE), 1)  # hoisted, not per-iter
           if mask_tail else None)

    def body(k, part):
        off = pl.multiple_of(k * LANE, LANE)
        v = x_ref[:, pl.ds(off, LANE)].astype(jnp.float32)
        if mask_tail:
            v = jnp.where((base_off + off + col) < s_total, v, 0.0)
        return part + v

    init = jnp.zeros((c_blk, LANE), jnp.float32)
    return lax.fori_loop(0, n_chunks, body, init,
                         unroll=max(1, min(8, n_chunks)))


def _tiny_mlp(mean_c1, w1t_ref, w2_ref):
    """sigmoid(W2 @ relu(W1 @ mean)) on the VPU; mean_c1 is (C, 1) f32."""
    w1t = w1t_ref[...].astype(jnp.float32)                              # (C, Hd)
    w2 = w2_ref[...].astype(jnp.float32)                                # (C, Hd)
    h = jnp.maximum(jnp.sum(w1t * mean_c1, axis=0, keepdims=True), 0.0)  # (1, Hd)
    return jax.nn.sigmoid(jnp.sum(w2 * h, axis=1, keepdims=True))        # (C, 1)


# ----------------------------------------------------------------------------
# Kernels
# ----------------------------------------------------------------------------
def _se3d_fused_kernel(x_ref, w1t_ref, w2_ref, o_ref, *, inv_s, s_total, mask_tail):
    # x_ref/o_ref: (C, s_blk) -- one batch element, spatial flattened on lanes.
    s_blk = x_ref.shape[1]
    part = _chunked_col_sum(x_ref, s_blk // LANE, 0, s_total, mask_tail)  # (C,128)
    mean = jnp.sum(part, axis=-1, keepdims=True) * inv_s                  # (C, 1)
    y = _tiny_mlp(mean, w1t_ref, w2_ref)                                  # (C, 1)
    # Re-read x (don't keep an up-cast slab live); multiply in the input dtype.
    o_ref[...] = x_ref[...] * y.astype(o_ref.dtype)


def _se3d_reduce_kernel(x_ref, w1t_ref, w2_ref, y_ref, acc_ref,
                        *, inv_s, s_total, ts, mask_tail):
    # grid = (N, T); t innermost ("arbitrary"), (C, 128) VMEM accumulator.
    t = pl.program_id(1)

    @pl.when(t == 0)
    def _():
        acc_ref[...] = jnp.zeros_like(acc_ref)

    part = _chunked_col_sum(x_ref, ts // LANE, t * ts, s_total, mask_tail)
    acc_ref[...] += part

    @pl.when(t == pl.num_programs(1) - 1)
    def _():
        mean = jnp.sum(acc_ref[...], axis=-1, keepdims=True) * inv_s      # (C, 1)
        y_ref[...] = _tiny_mlp(mean, w1t_ref, w2_ref).astype(y_ref.dtype)


def _se3d_scale_kernel(x_ref, y_ref, o_ref):
    # x_ref/o_ref: (C, ts); y_ref: (C, 1).  Partial edge stores are masked by
    # Pallas, so no explicit tail handling is needed here.
    o_ref[...] = x_ref[...] * y_ref[...].astype(o_ref.dtype)


# ----------------------------------------------------------------------------
# Wrapper
# ----------------------------------------------------------------------------
def se3d(x, w1, w2, *, force_two_pass=False, max_block_lanes=None):
    """SE3D forward.

    x:  (N, C, D, H, W)
    w1: (C//r, C)   -- nn.Linear(C, C//r, bias=False).weight
    w2: (C, C//r)   -- nn.Linear(C//r, C, bias=False).weight
    returns (N, C, D, H, W)
    """
    N, C, D, H, W = x.shape
    Hd = w1.shape[0]
    S = D * H * W
    itemsize = jnp.dtype(x.dtype).itemsize

    x3 = x.reshape(N, C, S)          # no padding: ragged tail handled in-kernel
    w1t = jnp.transpose(w1)          # (C, Hd)
    inv_s = 1.0 / float(S)

    vmem_limit = _vmem_budget_bytes()
    weights_bytes = 2 * C * Hd * 4
    headroom = 4 * 1024 * 1024

    s_blk = _round_up(S, LANE)       # lane-rounded spatial extent (fused path)

    # Fused single-pass gate: double-buffered input + output slabs + weights
    # must fit the per-generation VMEM budget (2 HBM passes instead of 3).
    fused_bytes = 4 * C * s_blk * itemsize + weights_bytes + headroom
    use_fused = ((not force_two_pass)
                 and (max_block_lanes is None or s_blk <= int(max_block_lanes))
                 and fused_bytes <= vmem_limit)

    if use_fused:
        # TODO(synk): on v7x with N == 1 only one TensorCore is busy here;
        # split the spatial axis across a second "parallel" grid axis with
        # per-core partial sums if that case matters.
        out3 = pl.pallas_call(
            partial(_se3d_fused_kernel, inv_s=inv_s, s_total=S,
                    mask_tail=(S % LANE) != 0),
            out_shape=jax.ShapeDtypeStruct((N, C, S), x.dtype),
            grid_spec=pltpu.PrefetchScalarGridSpec(
                num_scalar_prefetch=0,
                grid=(N,),
                in_specs=[
                    pl.BlockSpec((None, C, s_blk), lambda n: (n, 0, 0)),
                    pl.BlockSpec((C, Hd), lambda n: (0, 0)),
                    pl.BlockSpec((C, Hd), lambda n: (0, 0)),
                ],
                out_specs=pl.BlockSpec((None, C, s_blk), lambda n: (n, 0, 0)),
            ),
            compiler_params=pltpu.CompilerParams(
                dimension_semantics=("parallel",),
                vmem_limit_bytes=vmem_limit,
            ),
        )(x3, w1t, w2)
    else:
        # Per-block byte budget: (vmem_limit - weights - headroom) / 4 covers
        # double-buffered in + out tiles in the scale pass; 8 MiB cap already
        # sits at ~90%+ of the HBM roofline on v5e/v6e/v7x.
        blk_budget = min(8 * 1024 * 1024,
                         max(LANE * C * itemsize,
                             (vmem_limit - weights_bytes - headroom) // 4))
        max_ts = max(LANE, (blk_budget // (itemsize * C)) // LANE * LANE)
        if max_block_lanes is not None:
            max_ts = max(LANE, (int(max_block_lanes) // LANE) * LANE)
        ts = min(s_blk, max_ts)
        n_t = pl.cdiv(S, ts)
        mask_tail = (S % ts) != 0

        # Pass 1: spatially-tiled reduction (VPU chunk adds) + tiny MLP -> y
        y = pl.pallas_call(
            partial(_se3d_reduce_kernel, inv_s=inv_s, s_total=S, ts=ts,
                    mask_tail=mask_tail),
            out_shape=jax.ShapeDtypeStruct((N, C, 1), jnp.float32),
            grid_spec=pltpu.PrefetchScalarGridSpec(
                num_scalar_prefetch=0,
                grid=(N, n_t),
                in_specs=[
                    pl.BlockSpec((None, C, ts), lambda n, t: (n, 0, t)),
                    pl.BlockSpec((C, Hd), lambda n, t: (0, 0)),
                    pl.BlockSpec((C, Hd), lambda n, t: (0, 0)),
                ],
                out_specs=pl.BlockSpec((None, C, 1), lambda n, t: (n, 0, 0)),
                scratch_shapes=[pltpu.VMEM((C, LANE), jnp.float32)],
            ),
            compiler_params=pltpu.CompilerParams(
                dimension_semantics=("parallel", "arbitrary"),
                vmem_limit_bytes=vmem_limit,
            ),
        )(x3, w1t, w2)

        # Pass 2: broadcast scale, fully parallel over (N, T)
        out3 = pl.pallas_call(
            _se3d_scale_kernel,
            out_shape=jax.ShapeDtypeStruct((N, C, S), x.dtype),
            grid_spec=pltpu.PrefetchScalarGridSpec(
                num_scalar_prefetch=0,
                grid=(N, n_t),
                in_specs=[
                    pl.BlockSpec((None, C, ts), lambda n, t: (n, 0, t)),
                    pl.BlockSpec((None, C, 1), lambda n, t: (n, 0, 0)),
                ],
                out_specs=pl.BlockSpec((None, C, ts), lambda n, t: (n, 0, t)),
            ),
            compiler_params=pltpu.CompilerParams(
                dimension_semantics=("parallel", "parallel"),
                vmem_limit_bytes=vmem_limit,
            ),
        )(x3, y)

    return out3.reshape(N, C, D, H, W)


# ----------------------------------------------------------------------------
# Pure-JAX reference (matches PyTorch SE3D semantics)
# ----------------------------------------------------------------------------
def _reference(x, w1, w2):
    y = jnp.mean(x, axis=(2, 3, 4))                      # (N, C)
    h = jnp.maximum(y @ w1.T, 0.0)                       # (N, C//r)
    s = jax.nn.sigmoid(h @ w2.T)                         # (N, C)
    return x * s[:, :, None, None, None]


if __name__ == "__main__":
    def run_case(N, C, reduction, D, H, W, seed):
        Hd = max(1, C // reduction)
        key = jax.random.fold_in(jax.random.PRNGKey(0), seed)
        kx, k1, k2 = jax.random.split(key, 3)
        x = jax.random.normal(kx, (N, C, D, H, W), jnp.float32)
        w1 = jax.random.normal(k1, (Hd, C), jnp.float32) * 0.2
        w2 = jax.random.normal(k2, (C, Hd), jnp.float32) * 0.2
        ref = jax.block_until_ready(_reference(x, w1, w2))

        # fused single-pass path
        out = jax.block_until_ready(se3d(x, w1, w2))
        assert out.shape == (N, C, D, H, W), out.shape
        assert jnp.allclose(out, ref, rtol=1e-4, atol=1e-5), (
            float(jnp.max(jnp.abs(out - ref))))

        # two-pass spatially-tiled path (accumulator across lane tiles)
        out2 = jax.block_until_ready(
            se3d(x, w1, w2, force_two_pass=True, max_block_lanes=128))
        assert out2.shape == (N, C, D, H, W), out2.shape
        assert jnp.allclose(out2, ref, rtol=1e-4, atol=1e-5), (
            float(jnp.max(jnp.abs(out2 - ref))))

    # exact 128-multiple spatial extent (no tail masking): S = 8*8*8 = 512
    run_case(2, 32, 16, 8, 8, 8, seed=0)
    # ragged spatial extent (S = 6*6*6 = 216 -> partial edge blocks + masks)
    run_case(2, 32, 16, 6, 6, 6, seed=1)
    print("KERNEL_OK")
</pallas_src>

<mosaic_0001>
module attributes {stable_mosaic.version = 11 : i64} {
  func.func @_se3d_fused_kernel(%arg0: i32, %arg1: memref<1x32x512xf32, #tpu.memory_space<vmem>>, %arg2: memref<32x2xf32, #tpu.memory_space<vmem>>, %arg3: memref<32x2xf32, #tpu.memory_space<vmem>>, %arg4: memref<1x32x512xf32, #tpu.memory_space<vmem>>) attributes {dimension_semantics = [#tpu.dimension_semantics<parallel>], iteration_bounds = array<i64: 2>, scalar_prefetch = 0 : i64, scratch_operands = 0 : i64, tpu.core_type = #tpu.core_type<tc>, window_params = [{transform_indices = @transform_0, window_bounds = array<i64: 1, 32, 512>}, {pipeline_mode = #tpu.pipeline_mode<synchronous>, transform_indices = @transform_1, window_bounds = array<i64: 32, 2>}, {pipeline_mode = #tpu.pipeline_mode<synchronous>, transform_indices = @transform_2, window_bounds = array<i64: 32, 2>}, {transform_indices = @transform_3, window_bounds = array<i64: 1, 32, 512>}]} {
    %cst = arith.constant 0.000000e+00 : f32
    %0 = vector.broadcast %cst : f32 to vector<32x128xf32>
    %c0_i32 = arith.constant 0 : i32
    %c128_i32 = arith.constant 128 : i32
    %1 = arith.muli %c0_i32, %c128_i32 : i32
    %2 = tpu.assume_multiple %1, 128 : i32
    %c0 = arith.constant 0 : index
    %c0_0 = arith.constant 0 : index
    %3 = arith.index_cast %2 : i32 to index
    %4 = vector.load %arg1[%c0, %c0_0, %3] : memref<1x32x512xf32, #tpu.memory_space<vmem>>, vector<1x32x128xf32>
    %5 = vector.shape_cast %4 : vector<1x32x128xf32> to vector<32x128xf32>
    %6 = arith.addf %0, %5 : vector<32x128xf32>
    %c1_i32 = arith.constant 1 : i32
    %c128_i32_1 = arith.constant 128 : i32
    %7 = arith.muli %c1_i32, %c128_i32_1 : i32
    %8 = tpu.assume_multiple %7, 128 : i32
    %c0_2 = arith.constant 0 : index
    %c0_3 = arith.constant 0 : index
    %9 = arith.index_cast %8 : i32 to index
    %10 = vector.load %arg1[%c0_2, %c0_3, %9] : memref<1x32x512xf32, #tpu.memory_space<vmem>>, vector<1x32x128xf32>
    %11 = vector.shape_cast %10 : vector<1x32x128xf32> to vector<32x128xf32>
    %12 = arith.addf %6, %11 : vector<32x128xf32>
    %c2_i32 = arith.constant 2 : i32
    %c128_i32_4 = arith.constant 128 : i32
    %13 = arith.muli %c2_i32, %c128_i32_4 : i32
    %14 = tpu.assume_multiple %13, 128 : i32
    %c0_5 = arith.constant 0 : index
    %c0_6 = arith.constant 0 : index
    %15 = arith.index_cast %14 : i32 to index
    %16 = vector.load %arg1[%c0_5, %c0_6, %15] : memref<1x32x512xf32, #tpu.memory_space<vmem>>, vector<1x32x128xf32>
    %17 = vector.shape_cast %16 : vector<1x32x128xf32> to vector<32x128xf32>
    %18 = arith.addf %12, %17 : vector<32x128xf32>
    %c3_i32 = arith.constant 3 : i32
    %c128_i32_7 = arith.constant 128 : i32
    %19 = arith.muli %c3_i32, %c128_i32_7 : i32
    %20 = tpu.assume_multiple %19, 128 : i32
    %c0_8 = arith.constant 0 : index
    %c0_9 = arith.constant 0 : index
    %21 = arith.index_cast %20 : i32 to index
    %22 = vector.load %arg1[%c0_8, %c0_9, %21] : memref<1x32x512xf32, #tpu.memory_space<vmem>>, vector<1x32x128xf32>
    %23 = vector.shape_cast %22 : vector<1x32x128xf32> to vector<32x128xf32>
    %24 = arith.addf %18, %23 : vector<32x128xf32>
    %c4_i32 = arith.constant 4 : i32
    %cst_10 = arith.constant dense<0.000000e+00> : vector<32xf32>
    %25 = vector.multi_reduction <add>, %24, %cst_10 [1] : vector<32x128xf32> to vector<32xf32>
    %26 = vector.shape_cast %25 : vector<32xf32> to vector<32x1xf32>
    %cst_11 = arith.constant 0.001953125 : f32
    %27 = vector.broadcast %cst_11 : f32 to vector<32x1xf32>
    %28 = arith.mulf %26, %27 : vector<32x1xf32>
    %c0_12 = arith.constant 0 : index
    %c0_13 = arith.constant 0 : index
    %29 = vector.load %arg2[%c0_12, %c0_13] : memref<32x2xf32, #tpu.memory_space<vmem>>, vector<32x2xf32>
    %c0_14 = arith.constant 0 : index
    %c0_15 = arith.constant 0 : index
    %30 = vector.load %arg3[%c0_14, %c0_15] : memref<32x2xf32, #tpu.memory_space<vmem>>, vector<32x2xf32>
    %31 = vector.broadcast %28 : vector<32x1xf32> to vector<32x2xf32>
    %32 = arith.mulf %29, %31 : vector<32x2xf32>
    %cst_16 = arith.constant dense<0.000000e+00> : vector<2xf32>
    %33 = vector.multi_reduction <add>, %32, %cst_16 [0] : vector<32x2xf32> to vector<2xf32>
    %34 = vector.shape_cast %33 : vector<2xf32> to vector<1x2xf32>
    %cst_17 = arith.constant 0.000000e+00 : f32
    %35 = vector.broadcast %cst_17 : f32 to vector<1x2xf32>
    %36 = arith.maximumf %34, %35 : vector<1x2xf32>
    %37 = vector.broadcast %36 : vector<1x2xf32> to vector<32x2xf32>
    %38 = arith.mulf %30, %37 : vector<32x2xf32>
    %cst_18 = arith.constant dense<0.000000e+00> : vector<32xf32>
    %39 = vector.multi_reduction <add>, %38, %cst_18 [1] : vector<32x2xf32> to vector<32xf32>
    %40 = vector.shape_cast %39 : vector<32xf32> to vector<32x1xf32>
    %41 = arith.negf %40 : vector<32x1xf32>
    %42 = math.exp %41 : vector<32x1xf32>
    %cst_19 = arith.constant 1.000000e+00 : f32
    %43 = vector.broadcast %cst_19 : f32 to vector<32x1xf32>
    %44 = arith.addf %43, %42 : vector<32x1xf32>
    %45 = arith.divf %43, %44 : vector<32x1xf32>
    %c0_20 = arith.constant 0 : index
    %c0_21 = arith.constant 0 : index
    %c0_22 = arith.constant 0 : index
    %46 = vector.load %arg1[%c0_20, %c0_21, %c0_22] : memref<1x32x512xf32, #tpu.memory_space<vmem>>, vector<1x32x512xf32>
    %47 = vector.shape_cast %46 : vector<1x32x512xf32> to vector<32x512xf32>
    %48 = vector.broadcast %45 : vector<32x1xf32> to vector<32x512xf32>
    %49 = arith.mulf %47, %48 : vector<32x512xf32>
    %c0_23 = arith.constant 0 : index
    %c0_24 = arith.constant 0 : index
    %c0_25 = arith.constant 0 : index
    %50 = vector.load %arg4[%c0_23, %c0_24, %c0_25] : memref<1x32x512xf32, #tpu.memory_space<vmem>>, vector<1x32x512xf32>
    %51 = vector.shape_cast %50 : vector<1x32x512xf32> to vector<32x512xf32>
    %52 = vector.shape_cast %49 : vector<32x512xf32> to vector<1x32x512xf32>
    tpu.vector_store %arg4[%c0_23, %c0_24, %c0_25], %52 {strides = array<i32>} : memref<1x32x512xf32, #tpu.memory_space<vmem>>, vector<1x32x512xf32>,
    return
  }
  func.func @transform_0(%arg0: i32) -> (i32, i32, i32) {
    %c0_i32 = arith.constant 0 : i32
    %c0_i32_0 = arith.constant 0 : i32
    %c0_i32_1 = arith.constant 0 : i32
    return %arg0, %c0_i32, %c0_i32_0 : i32, i32, i32
  }
  func.func @transform_1(%arg0: i32) -> (i32, i32) {
    %c0_i32 = arith.constant 0 : i32
    %c0_i32_0 = arith.constant 0 : i32
    %c0_i32_1 = arith.constant 0 : i32
    return %c0_i32, %c0_i32_0 : i32, i32
  }
  func.func @transform_2(%arg0: i32) -> (i32, i32) {
    %c0_i32 = arith.constant 0 : i32
    %c0_i32_0 = arith.constant 0 : i32
    %c0_i32_1 = arith.constant 0 : i32
    return %c0_i32, %c0_i32_0 : i32, i32
  }
  func.func @transform_3(%arg0: i32) -> (i32, i32, i32) {
    %c0_i32 = arith.constant 0 : i32
    %c0_i32_0 = arith.constant 0 : i32
    %c0_i32_1 = arith.constant 0 : i32
    return %arg0, %c0_i32, %c0_i32_0 : i32, i32, i32
  }
}

</mosaic_0001>

<llo_original>
// kernel: tpu_custom_call.1
$region0: #{tpu_custom_call.1}
  #allocation0 [shape = 'u32[]', space=smem, size = 0x4, offset = 0x4, fixed_abs, tag = 'smem constant byte address 0x4 - core index']
  #allocation1 [shape = 'u32[144,128]{1,0:T(1,128)}', space=vmem, size = 0x12000, scoped, tag = 'internal scratch']
  %s0 = inlined_call_operand.hbm [shape: f32[2,32,512], index: 0, kind: input, shape index: {}]
  %s1 = inlined_call_operand.vmem [shape: f32[32,2], index: 1, kind: input, shape index: {}]
  %s2 = inlined_call_operand.vmem [shape: f32[32,2], index: 2, kind: input, shape index: {}]
  %s3 = inlined_call_operand.hbm [shape: f32[2,32,512], index: 3, kind: output, shape index: {}]
  %s4 = sld [smem:[#allocation0]]
  $region49: #{tpu_custom_call.1} parent=0
    _
  %s6 = ssub.s32 1, %s4
  %s7 = scalar_select 0, %s6, %s4
  $region1: #{tpu_custom_call.1} parent=0
    #allocation2 [shape = 'u8[131072]{0}', space=vmem, size = 0x20000, scoped, tag = 'input window, operand 0']
    #allocation3 [shape = 's32[2]{0}', space=sflag, size = 0x8, scoped, tag = 'scoped memory for tpu_custom_call.1']
    #allocation4 [shape = 's32[2]{0}', space=sflag, size = 0x8, scoped, tag = 'scoped memory for tpu_custom_call.1']
    #allocation5 [shape = 'u8[131072]{0}', space=vmem, size = 0x20000, scoped, tag = 'output window, operand 0']
    %8 = vsyncpa [#allocation3], 0
    %s9 = scalar_lea.sflag [#allocation3], 1
    %10 = vsyncpa %s9, 0
    %11 = vsyncpa [#allocation4], 0
    %s12 = scalar_lea.sflag [#allocation4], 1
    %13 = vsyncpa %s12, 0
    loop: start=0, step=1, limit=4
    $region2: #{tpu_custom_call.1} parent=1 // loop_pre_header
      _
    $region3: #{tpu_custom_call.1} parent=1 // loop_header
      %s15 = sphi 0, %s19
      %p16 = scmp.ge.s32.totalorder %s15, 4
      %s25 = sphi 0, %s27
      %s28 = sphi 0, %s25
      %s29 = sphi 0, %s28
      %s45 = sphi 0, %s29
      %s49 = sphi 0, %s49
      %s51 = sphi 0, %s49
      %s52 = sphi 0, %s51
      %s66 = sphi 0, %s52
      %s70 = sphi 0, %s70
      %s72 = sphi 0, %s70
      %s73 = sphi 0, %s72
      %s87 = sphi 0, %s73
      %s93 = sphi 0, %s95
      %s96 = sphi 0, %s93
      %s97 = sphi 0, %s96
      %s113 = sphi 0, %s97
    $region4: #{tpu_custom_call.1} parent=1 // loop_header_branch
      %18 = sbr.rel (%p16) target = $region8
    $region5: #{tpu_custom_call.1} parent=1 // loop_body
      %s20 = ssub.s32 %s15, 1
      %s21 = ssub.s32 %s15, 2
      %s22 = sadd.s32 %s15, 1
      %s23 = ssub.s32 %s15, %s22
      %p24 = scmp.eq.s32.totalorder %s23, 0
      %s26 = sadd.s32 %s25, 1
      %s27 = scalar_select %p24, %s25, %s26
      %p30 = pneg %p24
      %p31 = scmp.eq.s32.totalorder %s15, 1
      %p32 = por %p30, %p31
      %p33 = scmp.ne.s32.totalorder %s25, %s28
      %p34 = scmp.eq.s32.totalorder %s15, 0
      %p35 = por %p33, %p34
      %p36 = scmp.ne.s32.totalorder %s25, %s28
      %p37 = scmp.eq.s32.totalorder %s20, 1
      %p38 = por %p36, %p37
      %p39 = scmp.ne.s32.totalorder %s28, %s29
      %p40 = scmp.eq.s32.totalorder %s20, 0
      %p41 = por %p39, %p40
      %p42 = scmp.ne.s32.totalorder %s28, %s29
      %p43 = scmp.eq.s32.totalorder %s21, 1
      %p44 = por %p42, %p43
      %p46 = scmp.ne.s32.totalorder %s29, %s45
      %p47 = scmp.eq.s32.totalorder %s21, 0
      %p48 = por %p46, %p47
      %s50 = sadd.s32 %s49, 1
      %p53 = scmp.eq.s32.totalorder %s15, 1
      %p54 = scmp.ne.s32.totalorder %s49, %s51
      %p55 = scmp.eq.s32.totalorder %s15, 0
      %p56 = por %p54, %p55
      %p57 = scmp.ne.s32.totalorder %s49, %s51
      %p58 = scmp.eq.s32.totalorder %s20, 1
      %p59 = por %p57, %p58
      %p60 = scmp.ne.s32.totalorder %s51, %s52
      %p61 = scmp.eq.s32.totalorder %s20, 0
      %p62 = por %p60, %p61
      %p63 = scmp.ne.s32.totalorder %s51, %s52
      %p64 = scmp.eq.s32.totalorder %s21, 1
      %p65 = por %p63, %p64
      %p67 = scmp.ne.s32.totalorder %s52, %s66
      %p68 = scmp.eq.s32.totalorder %s21, 0
      %p69 = por %p67, %p68
      %s71 = sadd.s32 %s70, 1
      %p74 = scmp.eq.s32.totalorder %s15, 1
      %p75 = scmp.ne.s32.totalorder %s70, %s72
      %p76 = scmp.eq.s32.totalorder %s15, 0
      %p77 = por %p75, %p76
      %p78 = scmp.ne.s32.totalorder %s70, %s72
      %p79 = scmp.eq.s32.totalorder %s20, 1
      %p80 = por %p78, %p79
      %p81 = scmp.ne.s32.totalorder %s72, %s73
      %p82 = scmp.eq.s32.totalorder %s20, 0
      %p83 = por %p81, %p82
      %p84 = scmp.ne.s32.totalorder %s72, %s73
      %p85 = scmp.eq.s32.totalorder %s21, 1
      %p86 = por %p84, %p85
      %p88 = scmp.ne.s32.totalorder %s73, %s87
      %p89 = scmp.eq.s32.totalorder %s21, 0
      %p90 = por %p88, %p89
      %s91 = ssub.s32 %s15, %s22
      %p92 = scmp.eq.s32.totalorder %s91, 0
      %s94 = sadd.s32 %s93, 1
      %s95 = scalar_select %p92, %s93, %s94
      %p98 = pneg %p92
      %p99 = scmp.eq.s32.totalorder %s15, 1
      %p100 = por %p98, %p99
      %p101 = scmp.ne.s32.totalorder %s93, %s96
      %p102 = scmp.eq.s32.totalorder %s15, 0
      %p103 = por %p101, %p102
      %p104 = scmp.ne.s32.totalorder %s93, %s96
      %p105 = scmp.eq.s32.totalorder %s20, 1
      %p106 = por %p104, %p105
      %p107 = scmp.ne.s32.totalorder %s96, %s97
      %p108 = scmp.eq.s32.totalorder %s20, 0
      %p109 = por %p107, %p108
      %p110 = scmp.ne.s32.totalorder %s96, %s97
      %p111 = scmp.eq.s32.totalorder %s21, 1
      %p112 = por %p110, %p111
      %p114 = scmp.ne.s32.totalorder %s97, %s113
      %p115 = scmp.eq.s32.totalorder %s21, 0
      %p116 = por %p114, %p115
      %p117 = scmp.le.s32.totalorder 1, %s15
      %p118 = scmp.lt.s32.totalorder %s15, 3
      %p119 = pnand %p117, %p118
      %p120 = pneg %p119
      // Predicated region
      $region9: #{tpu_custom_call.1} parent=5 // pred_check
        _
      $region10: #{tpu_custom_call.1} parent=5 // pred_check_branch
        %122 = sbr.rel (%p119) target = $region12
      $region11: #{tpu_custom_call.1} parent=5 // pred_region
        %s123 = ssub.s32 %s15, 1
        // Predicated region
        $region13: #{tpu_custom_call.1} parent=11 // pred_check
          %p124 = pneg %p62
        $region14: #{tpu_custom_call.1} parent=11 // pred_check_branch
          %126 = sbr.rel (%p124) target = $region16
        $region15: #{tpu_custom_call.1} parent=11 // pred_region
          _
        $region16: #{tpu_custom_call.1} parent=11 // pred_fallthru
          _
        // Predicated region
        $region17: #{tpu_custom_call.1} parent=11 // pred_check
          %p127 = pneg %p83
        $region18: #{tpu_custom_call.1} parent=11 // pred_check_branch
          %129 = sbr.rel (%p127) target = $region20
        $region19: #{tpu_custom_call.1} parent=11 // pred_region
          _
        $region20: #{tpu_custom_call.1} parent=11 // pred_fallthru
          _
      $region12: #{tpu_custom_call.1} parent=5 // pred_fallthru
        _
      %p130 = scmp.lt.s32.totalorder %s15, 2
      // Predicated region
      $region21: #{tpu_custom_call.1} parent=5 // pred_check
        %p131 = pneg %p130
      $region22: #{tpu_custom_call.1} parent=5 // pred_check_branch
        %133 = sbr.rel (%p131) target = $region24
      $region23: #{tpu_custom_call.1} parent=5 // pred_region
        // Predicated region
        $region25: #{tpu_custom_call.1} parent=23 // pred_check
          %p134 = pneg %p35
        $region26: #{tpu_custom_call.1} parent=23 // pred_check_branch
          %136 = sbr.rel (%p134) target = $region28
        $region27: #{tpu_custom_call.1} parent=23 // pred_region
          %s137 = sand.u32 %s25, 1
          %s138 = scalar_lea.sflag [#allocation3], %s137
          %s139 = sand.u32 %s25, 1
          %s140 = smul.addr %s139, 128
          %s141 = scalar_lea.vmem [#allocation2], %s140
          %s143 = ssub.s32 2048, 2048
          %144 = vsyncadd %s138, %s143
          %s145 = smul.addr %s15, 16
          %s146 = smul.addr %s145, 128
          %s147 = scalar_lea.hbm %s0, %s146
          %s148 = sshll.u32 %s141, 4
          %s149 = int_to_ptr.vmem [resolvable:$true] %s148
          %154 = dma.hbm_to_vmem [thread:$0]  %s147, 2048, %s149, %s138, 512, 512, 32
        $region28: #{tpu_custom_call.1} parent=23 // pred_fallthru
          _
      $region24: #{tpu_custom_call.1} parent=5 // pred_fallthru
        _
      %p155 = scmp.le.s32.totalorder 1, %s15
      %p156 = scmp.lt.s32.totalorder %s15, 3
      %p157 = pnand %p155, %p156
      %p158 = pneg %p157
      // Predicated region
      $region29: #{tpu_custom_call.1} parent=5 // pred_check
        _
      $region30: #{tpu_custom_call.1} parent=5 // pred_check_branch
        %160 = sbr.rel (%p157) target = $region32
      $region31: #{tpu_custom_call.1} parent=5 // pred_region
        %s161 = ssub.s32 %s15, 1
        %s162 = sand.u32 %s28, 1
        %s163 = scalar_lea.sflag [#allocation3], %s162
        %s164 = sand.u32 %s28, 1
        %s165 = smul.addr %s164, 128
        %s166 = scalar_lea.vmem [#allocation2], %s165
        // Predicated region
        $region33: #{tpu_custom_call.1} parent=31 // pred_check
          %p167 = pneg %p41
        $region34: #{tpu_custom_call.1} parent=31 // pred_check_branch
          %169 = sbr.rel (%p167) target = $region36
        $region35: #{tpu_custom_call.1} parent=31 // pred_region
          %170 = dma.done %s163, 2048
        $region36: #{tpu_custom_call.1} parent=31 // pred_fallthru
          _
        %s171 = sand.u32 %s28, 1
        %s172 = scalar_lea.sflag [#allocation3], %s171
        %s173 = sand.u32 %s28, 1
        %s174 = smul.addr %s173, 128
        %s175 = scalar_lea.vmem [#allocation2], %s174
        %p176 = pneg %p41
        %p177 = pneg %p38
        %p178 = pneg %p62
        %p179 = pneg %p59
        %p180 = pneg %p83
        %p181 = pneg %p80
        %p182 = pneg %p109
        %p183 = pneg %p106
        %s184 = sand.u32 %s96, 1
        %s185 = scalar_lea.sflag [#allocation4], %s184
        %s186 = sand.u32 %s96, 1
        %s187 = smul.addr %s186, 128
        %s188 = scalar_lea.vmem [#allocation5], %s187
        %v189 = vld [vmem:[%s166] sm:$0xff]
        %v190 = vld [vmem:[%s166 + $0x20] sm:$0xff]
        %v191 = vld [vmem:[%s166 + $0x40] sm:$0xff]
        %v192 = vld [vmem:[%s166 + $0x60] sm:$0xff]
        %v193 = vadd.f32 %v189, 0.0
        %v194 = vadd.f32 %v190, 0.0
        %v195 = vadd.f32 %v191, 0.0
        %v196 = vadd.f32 %v192, 0.0
        %s197 = scalar_lea.vmem %s166, 8 [#allocation2]
        %v198 = vld [vmem:[%s197] sm:$0xff]
        %v199 = vld [vmem:[%s197 + $0x20] sm:$0xff]
        %v200 = vld [vmem:[%s197 + $0x40] sm:$0xff]
        %v201 = vld [vmem:[%s197 + $0x60] sm:$0xff]
        %v202 = vadd.f32 %v193, %v198
        %v203 = vadd.f32 %v194, %v199
        %v204 = vadd.f32 %v195, %v200
        %v205 = vadd.f32 %v196, %v201
        %s206 = scalar_lea.vmem %s166, 16 [#allocation2]
        %v207 = vld [vmem:[%s206] sm:$0xff]
        %v208 = vld [vmem:[%s206 + $0x20] sm:$0xff]
        %v209 = vld [vmem:[%s206 + $0x40] sm:$0xff]
        %v210 = vld [vmem:[%s206 + $0x60] sm:$0xff]
        %v211 = vadd.f32 %v202, %v207
        %v212 = vadd.f32 %v203, %v208
        %v213 = vadd.f32 %v204, %v209
        %v214 = vadd.f32 %v205, %v210
        %s215 = scalar_lea.vmem %s166, 24 [#allocation2]
        %v216 = vld [vmem:[%s215] sm:$0xff]
        %v217 = vld [vmem:[%s215 + $0x20] sm:$0xff]
        %v218 = vld [vmem:[%s215 + $0x40] sm:$0xff]
        %v219 = vld [vmem:[%s215 + $0x60] sm:$0xff]
        %v220 = vadd.f32 %v211, %v216
        %v221 = vadd.f32 %v212, %v217
        %v222 = vadd.f32 %v213, %v218
        %v223 = vadd.f32 %v214, %v219
        %224 = vadd.xlane.f32.xlu0 %v220
        %v225 = vpop.xlane.xlu0 %224
        %226 = vadd.xlane.f32.xlu0 %v221
        %v227 = vpop.xlane.xlu0 %226
        %228 = vadd.xlane.f32.xlu0 %v222
        %v229 = vpop.xlane.xlu0 %228
        %230 = vadd.xlane.f32.xlu0 %v223
        %v231 = vpop.xlane.xlu0 %230
        %v232 = vmul.f32 %v225, 0.001953125
        %v233 = vmul.f32 %v227, 0.001953125
        %v234 = vmul.f32 %v229, 0.001953125
        %v235 = vmul.f32 %v231, 0.001953125
        %v236 = vld [vmem:[%s1] sm:$0xff]
        %v237 = vld [vmem:[%s1 + $0x8] sm:$0xff]
        %v238 = vld [vmem:[%s1 + $0x10] sm:$0xff]
        %v239 = vld [vmem:[%s1 + $0x18] sm:$0xff]
        %v240 = vld [vmem:[%s2] sm:$0xff]
        %v241 = vld [vmem:[%s2 + $0x8] sm:$0xff]
        %v242 = vld [vmem:[%s2 + $0x10] sm:$0xff]
        %v243 = vld [vmem:[%s2 + $0x18] sm:$0xff]
        %v244 = vmul.f32 %v236, %v232
        %v245 = vmul.f32 %v237, %v233
        %v246 = vmul.f32 %v238, %v234
        %v247 = vmul.f32 %v239, %v235
        %vm248 = vcmask 15360
        %v249 = vsel %vm248, %v244, 0.0
        %v250 = vsel %vm248, %v245, 0.0
        %v251 = vadd.f32 %v249, %v250
        %v252 = vsel %vm248, %v246, 0.0
        %v253 = vadd.f32 %v251, %v252
        %v254 = vsel %vm248, %v247, 0.0
        %v255 = vadd.f32 %v253, %v254
        %v256 = vrot.slane %v255, 4
        %v257 = vadd.f32 %v255, %v256
        %v258 = vrot.slane %v257, 2
        %v259 = vadd.f32 %v257, %v258
        %v260 = vrot.slane %v259, 1
        %v261 = vadd.f32 %v259, %v260
        %v262 = vmax.f32 %v261, 0.0
        %v263 = vmul.f32 %v240, %v262
        %v264 = vmul.f32 %v241, %v262
        %v265 = vmul.f32 %v242, %v262
        %v266 = vmul.f32 %v243, %v262
        %v267 = vsel %vm248, %v263, 0.0
        %268 = vadd.xlane.f32.xlu0 %v267
        %v269 = vpop.xlane.xlu0 %268
        %v270 = vsel %vm248, %v264, 0.0
        %271 = vadd.xlane.f32.xlu0 %v270
        %v272 = vpop.xlane.xlu0 %271
        %v273 = vsel %vm248, %v265, 0.0
        %274 = vadd.xlane.f32.xlu0 %v273
        %v275 = vpop.xlane.xlu0 %274
        %v276 = vsel %vm248, %v266, 0.0
        %277 = vadd.xlane.f32.xlu0 %v276
        %v278 = vpop.xlane.xlu0 %277
        %v279 = vxor.u32 %v269, 2147483648
        %v280 = vxor.u32 %v272, 2147483648
        %v281 = vxor.u32 %v275, 2147483648
        %v282 = vxor.u32 %v278, 2147483648
        %v283 = vmul.f32 %v279, 1.442695
        %v284 = vpow.pop %v283
        %v285 = vmul.f32 %v280, 1.442695
        %v286 = vpow.pop %v285
        %v287 = vmul.f32 %v281, 1.442695
        %v288 = vpow.pop %v287
        %v289 = vmul.f32 %v282, 1.442695
        %v290 = vpow.pop %v289
        %v291 = vadd.f32 %v284, 1.0
        %v292 = vadd.f32 %v286, 1.0
        %v293 = vadd.f32 %v288, 1.0
        %v294 = vadd.f32 %v290, 1.0
        %v295 = vrcp.pop %v291
        %v296 = vmul.f32 1.0, %v295
        %v297 = vrcp.pop %v292
        %v298 = vmul.f32 1.0, %v297
        %v299 = vrcp.pop %v293
        %v300 = vmul.f32 1.0, %v299
        %v301 = vrcp.pop %v294
        %v302 = vmul.f32 1.0, %v301
        %v303 = vld [vmem:[%s166] sm:$0xff]
        %v304 = vld [vmem:[%s166 + $0x8] sm:$0xff]
        %v305 = vld [vmem:[%s166 + $0x10] sm:$0xff]
        %v306 = vld [vmem:[%s166 + $0x18] sm:$0xff]
        %v307 = vld [vmem:[%s166 + $0x20] sm:$0xff]
        %v308 = vld [vmem:[%s166 + $0x28] sm:$0xff]
        %v309 = vld [vmem:[%s166 + $0x30] sm:$0xff]
        %v310 = vld [vmem:[%s166 + $0x38] sm:$0xff]
        %v311 = vld [vmem:[%s166 + $0x40] sm:$0xff]
        %v312 = vld [vmem:[%s166 + $0x48] sm:$0xff]
        %v313 = vld [vmem:[%s166 + $0x50] sm:$0xff]
        %v314 = vld [vmem:[%s166 + $0x58] sm:$0xff]
        %v315 = vld [vmem:[%s166 + $0x60] sm:$0xff]
        %v316 = vld [vmem:[%s166 + $0x68] sm:$0xff]
        %v317 = vld [vmem:[%s166 + $0x70] sm:$0xff]
        %v318 = vld [vmem:[%s166 + $0x78] sm:$0xff]
        %v319 = vmul.f32 %v303, %v296
        %v320 = vmul.f32 %v304, %v296
        %v321 = vmul.f32 %v305, %v296
        %v322 = vmul.f32 %v306, %v296
        %v323 = vmul.f32 %v307, %v298
        %v324 = vmul.f32 %v308, %v298
        %v325 = vmul.f32 %v309, %v298
        %v326 = vmul.f32 %v310, %v298
        %v327 = vmul.f32 %v311, %v300
        %v328 = vmul.f32 %v312, %v300
        %v329 = vmul.f32 %v313, %v300
        %v330 = vmul.f32 %v314, %v300
        %v331 = vmul.f32 %v315, %v302
        %v332 = vmul.f32 %v316, %v302
        %v333 = vmul.f32 %v317, %v302
        %v334 = vmul.f32 %v318, %v302
        %335 = vst [vmem:[%s188] sm:$0xff] %v319
        %336 = vst [vmem:[%s188 + $0x8] sm:$0xff] %v320
        %337 = vst [vmem:[%s188 + $0x10] sm:$0xff] %v321
        %338 = vst [vmem:[%s188 + $0x18] sm:$0xff] %v322
        %339 = vst [vmem:[%s188 + $0x20] sm:$0xff] %v323
        %340 = vst [vmem:[%s188 + $0x28] sm:$0xff] %v324
        %341 = vst [vmem:[%s188 + $0x30] sm:$0xff] %v325
        %342 = vst [vmem:[%s188 + $0x38] sm:$0xff] %v326
        %343 = vst [vmem:[%s188 + $0x40] sm:$0xff] %v327
        %344 = vst [vmem:[%s188 + $0x48] sm:$0xff] %v328
        %345 = vst [vmem:[%s188 + $0x50] sm:$0xff] %v329
        %346 = vst [vmem:[%s188 + $0x58] sm:$0xff] %v330
        %347 = vst [vmem:[%s188 + $0x60] sm:$0xff] %v331
        %348 = vst [vmem:[%s188 + $0x68] sm:$0xff] %v332
        %349 = vst [vmem:[%s188 + $0x70] sm:$0xff] %v333
        %350 = vst [vmem:[%s188 + $0x78] sm:$0xff] %v334
        %s351 = sand.u32 %s96, 1
        %s352 = scalar_lea.sflag [#allocation4], %s351
        %s353 = sand.u32 %s96, 1
        %s354 = smul.addr %s353, 128
        %s355 = scalar_lea.vmem [#allocation5], %s354
        // Predicated region
        $region37: #{tpu_custom_call.1} parent=31 // pred_check
          %p356 = pneg %p106
        $region38: #{tpu_custom_call.1} parent=31 // pred_check_branch
          %358 = sbr.rel (%p356) target = $region40
        $region39: #{tpu_custom_call.1} parent=31 // pred_region
          %s360 = ssub.s32 2048, 2048
          %361 = vsyncadd %s352, %s360
          %s362 = smul.addr %s20, 16
          %s363 = smul.addr %s362, 128
          %s364 = scalar_lea.hbm %s3, %s363
          %s365 = sshll.u32 %s355, 4
          %s366 = int_to_ptr.vmem [resolvable:$true] %s365
          %371 = dma.vmem_to_hbm [thread:$0]  %s366, 2048, %s364, %s352, 512, 512, 32
        $region40: #{tpu_custom_call.1} parent=31 // pred_fallthru
          _
      $region32: #{tpu_custom_call.1} parent=5 // pred_fallthru
        _
      %p372 = scmp.le.s32.totalorder 2, %s15
      // Predicated region
      $region41: #{tpu_custom_call.1} parent=5 // pred_check
        %p373 = pneg %p372
      $region42: #{tpu_custom_call.1} parent=5 // pred_check_branch
        %375 = sbr.rel (%p373) target = $region44
      $region43: #{tpu_custom_call.1} parent=5 // pred_region
        %s376 = ssub.s32 %s15, 2
        // Predicated region
        $region45: #{tpu_custom_call.1} parent=43 // pred_check
          %p377 = pneg %p112
        $region46: #{tpu_custom_call.1} parent=43 // pred_check_branch
          %379 = sbr.rel (%p377) target = $region48
        $region47: #{tpu_custom_call.1} parent=43 // pred_region
          %s380 = sand.u32 %s97, 1
          %s381 = scalar_lea.sflag [#allocation4], %s380
          %s382 = sand.u32 %s97, 1
          %s383 = smul.addr %s382, 128
          %s384 = scalar_lea.vmem [#allocation5], %s383
          %385 = dma.done %s381, 2048
        $region48: #{tpu_custom_call.1} parent=43 // pred_fallthru
          _
      $region44: #{tpu_custom_call.1} parent=5 // pred_fallthru
        _
    $region6: #{tpu_custom_call.1} parent=1 // loop_footer
      %s19 = sadd.s32 1, %s15
    $region7: #{tpu_custom_call.1} parent=1 // loop_footer_branch
      %14 = sbr.rel target = $region3
    $region8: #{tpu_custom_call.1} parent=1 // loop_exit
      _
    %386 = vsyncpa [#allocation3], 1
    %s387 = scalar_lea.sflag [#allocation3], 1
    %388 = vsyncpa %s387, 1
    %389 = vsyncpa [#allocation4], 1
    %s390 = scalar_lea.sflag [#allocation4], 1
    %391 = vsyncpa %s390, 1

</llo_original>
